<compile_context>
chip_gen: v7x
topology: tpu7x:2x2x1
jax: 0.10.0
libtpu: 0.0.40
codegen_flags: <defaults>
</compile_context>

<pallas_src>
import jax
import jax.numpy as jnp
from jax.experimental import pallas as pl
from jax.experimental.pallas import tpu as pltpu


# Weight slab (bf16, (80, 128), ~20 KB, one-time resident DMA):
#   rows  0:24, cols 0:4   -> fc1 weight, transposed   (24, 4)
#   rows 32:68, cols 0:24  -> fc2 weight, transposed   (36, 24)
_WSLAB_SHAPE = (80, 128)

# Aux slab (f32, (104, 128), ~53 KB, one-time resident DMA):
#   rows  0:24,  col 0 -> fc1 bias              (24,)
#   rows 24:60,  col 0 -> fc2 bias              (36,)
#   rows 64:100, col 0 -> fc3 weight as column  (36,)
#   row   0,     col 1 -> fc3 bias              (1,)
_AUX_SHAPE = (104, 128)

_MAX_TB = 8192  # lanes per batch tile; sweepable {2048..16384}, all fit VMEM


def _cdiv(a, b):
    return -(-a // b)


def _pick_tb(B):
    """Batch tile in lanes: multiple of 128, >=2 grid steps when B > 128, <= _MAX_TB."""
    tiles = _cdiv(B, 128)
    tb_tiles = min(_MAX_TB // 128, max(1, _cdiv(tiles, 2)))
    return 128 * tb_tiles


def policy_net_kernel(w_ref, aux_ref, xt_ref, o_ref):
    # Weights are pre-cast bf16, each in its own aligned region: static slices,
    # no per-step casts. Both param blocks are resident across grid steps.
    w1t = w_ref[0:24, 0:4]        # (24, 4)  bf16
    w2t = w_ref[32:68, 0:24]      # (36, 24) bf16
    b1 = aux_ref[0:24, 0:1]       # (24, 1)  f32
    b2 = aux_ref[24:60, 0:1]      # (36, 1)  f32
    w3c = aux_ref[64:100, 0:1]    # (36, 1)  f32 (fc3 weight as a column)
    b3 = aux_ref[0:1, 1:2]        # (1, 1)   f32

    xt = xt_ref[...]              # (4, TB) bf16 -- batch on the 128-lane axis

    # fc1 + relu  (MXU, bf16 inputs, f32 accumulation)
    h1 = jnp.dot(w1t, xt, preferred_element_type=jnp.float32) + b1
    h1 = jnp.maximum(h1, 0.0)

    # fc2 + relu
    h2 = jnp.dot(w2t, h1.astype(jnp.bfloat16),
                 preferred_element_type=jnp.float32) + b2
    h2 = jnp.maximum(h2, 0.0)

    # fc3 (out_features == 1): VPU broadcast-multiply + sublane reduce (XLU),
    # avoiding a 1-column MXU push.
    h3 = jnp.sum(h2 * w3c, axis=0, keepdims=True) + b3      # (1, TB)

    # sigmoid(x) = 0.5 * tanh(0.5 * x) + 0.5 : single EUP op, no approx recip.
    o_ref[...] = (0.5 * jnp.tanh(0.5 * h3) + 0.5).astype(o_ref.dtype)


def pack_params(params):
    """Pack params into (weight_slab_bf16, aux_slab_f32). Call ONCE per policy update.

    w* stored (in, out); b* stored (out,) or (1, out); w3 may be (36, 1) or (36,).
    """
    w1, b1, w2, b2, w3, b3 = (jnp.asarray(params[k], jnp.float32)
                              for k in ("w1", "b1", "w2", "b2", "w3", "b3"))
    b1, b2, b3, w3c = (a.reshape(-1) for a in (b1, b2, b3, w3))

    wslab = jnp.zeros(_WSLAB_SHAPE, jnp.bfloat16)
    wslab = wslab.at[0:24, 0:4].set(w1.T.astype(jnp.bfloat16))
    wslab = wslab.at[32:68, 0:24].set(w2.T.astype(jnp.bfloat16))

    aux = jnp.zeros(_AUX_SHAPE, jnp.float32)
    aux = aux.at[0:24, 0].set(b1)
    aux = aux.at[24:60, 0].set(b2)
    aux = aux.at[64:100, 0].set(w3c)
    aux = aux.at[0, 1].set(b3[0])
    return wslab, aux


@jax.jit
def _policy_forward_packed(x, wslab, aux):
    B = x.shape[0]
    TB = _pick_tb(B)
    B_pad = TB * _cdiv(B, TB)
    grid = (B_pad // TB,)

    # Transpose + zero-pad + bf16 cast, fused into one pass under jit:
    # batch lands on the 128-lane axis, x stream halved to 8 B/elem.
    xt = jnp.zeros((4, B_pad), jnp.bfloat16).at[:, :B].set(
        x.T.astype(jnp.bfloat16))

    cost = pl.CostEstimate(
        flops=2 * B_pad * (4 * 24 + 24 * 36 + 36 * 1),
        transcendentals=B_pad,  # one tanh per element
        bytes_accessed=(xt.size * 2 + wslab.size * 2 + aux.size * 4
                        + B_pad * 4),
    )

    out = pl.pallas_call(
        policy_net_kernel,
        out_shape=jax.ShapeDtypeStruct((1, B_pad), jnp.float32),
        grid=grid,
        in_specs=[
            pl.BlockSpec(_WSLAB_SHAPE, lambda i: (0, 0)),  # weights: resident
            pl.BlockSpec(_AUX_SHAPE, lambda i: (0, 0)),    # biases:  resident
            pl.BlockSpec((4, TB), lambda i: (0, i)),       # x^T tiles (pipelined)
        ],
        out_specs=pl.BlockSpec((1, TB), lambda i: (0, i)),  # lane-dense output
        compiler_params=pltpu.CompilerParams(dimension_semantics=("parallel",)),
        cost_estimate=cost,
    )(wslab, aux, xt)

    # Back to the PyTorch-shaped (B, 1) output.
    return out[0, :B].reshape(B, 1)


def policy_net_forward(x, packed):
    """x: (B, 4) float32. packed: output of pack_params(params) (cached)."""
    wslab, aux = packed
    return _policy_forward_packed(x, wslab, aux)


def init_params(key):
    """Deterministic init mirroring torch.nn.Linear default: U(-1/sqrt(fan_in), 1/sqrt(fan_in))."""
    dims = [(4, 24), (24, 36), (36, 1)]
    params = {}
    keys = jax.random.split(key, 2 * len(dims))
    for i, (fan_in, fan_out) in enumerate(dims):
        bound = 1.0 / jnp.sqrt(float(fan_in))
        params[f"w{i+1}"] = jax.random.uniform(
            keys[2 * i], (fan_in, fan_out), jnp.float32, -bound, bound
        )
        params[f"b{i+1}"] = jax.random.uniform(
            keys[2 * i + 1], (1, fan_out), jnp.float32, -bound, bound
        )
    return params


if __name__ == "__main__":
    key = jax.random.PRNGKey(0)
    pkey, xkey = jax.random.split(key)
    params = init_params(pkey)

    # Pack once (per policy update), reuse across forward calls.
    packed = pack_params(params)

    # CartPole-style observation: batch of 8 state vectors of dim 4.
    x = jax.random.normal(xkey, (8, 4), jnp.float32)

    out = jax.block_until_ready(policy_net_forward(x, packed))

    # sanity: shape (8, 1), values in [0, 1] from sigmoid
    assert out.shape == (8, 1)
    assert bool(jnp.all((out >= 0.0) & (out <= 1.0)))

    # cross-check against plain-JAX f32 reference (kernel uses bf16 MXU inputs
    # and bf16 x stream -> tolerance a bit looser than pure f32)
    def ref(x, p):
        h = jnp.maximum(x @ p["w1"] + p["b1"], 0.0)
        h = jnp.maximum(h @ p["w2"] + p["b2"], 0.0)
        return jax.nn.sigmoid(h @ p["w3"] + p["b3"])

    err = float(jnp.max(jnp.abs(out - ref(x, params))))
    assert err < 2e-2, err

    print("KERNEL_OK")
</pallas_src>

<mosaic_0001>
module attributes {stable_mosaic.version = 11 : i64} {
  func.func @policy_net_kernel(%arg0: i32, %arg1: memref<80x128xbf16, #tpu.memory_space<vmem>>, %arg2: memref<104x128xf32, #tpu.memory_space<vmem>>, %arg3: memref<4x128xbf16, #tpu.memory_space<vmem>>, %arg4: memref<1x128xf32, #tpu.memory_space<vmem>>) attributes {dimension_semantics = [#tpu.dimension_semantics<parallel>], iteration_bounds = array<i64: 1>, scalar_prefetch = 0 : i64, scratch_operands = 0 : i64, tpu.core_type = #tpu.core_type<tc>, window_params = [{pipeline_mode = #tpu.pipeline_mode<synchronous>, transform_indices = @transform_0, window_bounds = array<i64: 80, 128>}, {pipeline_mode = #tpu.pipeline_mode<synchronous>, transform_indices = @transform_1, window_bounds = array<i64: 104, 128>}, {transform_indices = @transform_2, window_bounds = array<i64: 4, 128>}, {transform_indices = @transform_3, window_bounds = array<i64: 1, 128>}]} {
    %c0 = arith.constant 0 : index
    %c0_0 = arith.constant 0 : index
    %0 = vector.load %arg1[%c0, %c0_0] : memref<80x128xbf16, #tpu.memory_space<vmem>>, vector<24x4xbf16>
    %c32 = arith.constant 32 : index
    %c0_1 = arith.constant 0 : index
    %1 = vector.load %arg1[%c32, %c0_1] : memref<80x128xbf16, #tpu.memory_space<vmem>>, vector<36x24xbf16>
    %c0_2 = arith.constant 0 : index
    %c0_3 = arith.constant 0 : index
    %2 = vector.load %arg2[%c0_2, %c0_3] : memref<104x128xf32, #tpu.memory_space<vmem>>, vector<24x1xf32>
    %c24 = arith.constant 24 : index
    %c0_4 = arith.constant 0 : index
    %3 = vector.load %arg2[%c24, %c0_4] : memref<104x128xf32, #tpu.memory_space<vmem>>, vector<36x1xf32>
    %c64 = arith.constant 64 : index
    %c0_5 = arith.constant 0 : index
    %4 = vector.load %arg2[%c64, %c0_5] : memref<104x128xf32, #tpu.memory_space<vmem>>, vector<36x1xf32>
    %c0_6 = arith.constant 0 : index
    %c1 = arith.constant 1 : index
    %5 = vector.load %arg2[%c0_6, %c1] : memref<104x128xf32, #tpu.memory_space<vmem>>, vector<1x1xf32>
    %c0_7 = arith.constant 0 : index
    %c0_8 = arith.constant 0 : index
    %6 = vector.load %arg3[%c0_7, %c0_8] : memref<4x128xbf16, #tpu.memory_space<vmem>>, vector<4x128xbf16>
    %cst = arith.constant dense<0.000000e+00> : vector<24x128xf32>
    %7 = tpu.matmul %0, %6, %cst {dimension_numbers = #tpu.dot_dimension_numbers<[1], [0], [0], [1], [0, 0, 1, 1], [], []>} : vector<24x4xbf16>, vector<4x128xbf16>, vector<24x128xf32> -> vector<24x128xf32>
    %8 = vector.broadcast %2 : vector<24x1xf32> to vector<24x128xf32>
    %9 = arith.addf %7, %8 : vector<24x128xf32>
    %cst_9 = arith.constant 0.000000e+00 : f32
    %10 = vector.broadcast %cst_9 : f32 to vector<24x128xf32>
    %11 = arith.maximumf %9, %10 : vector<24x128xf32>
    %12 = arith.truncf %11 : vector<24x128xf32> to vector<24x128xbf16>
    %cst_10 = arith.constant dense<0.000000e+00> : vector<36x128xf32>
    %13 = tpu.matmul %1, %12, %cst_10 {dimension_numbers = #tpu.dot_dimension_numbers<[1], [0], [0], [1], [0, 0, 1, 1], [], []>} : vector<36x24xbf16>, vector<24x128xbf16>, vector<36x128xf32> -> vector<36x128xf32>
    %14 = vector.broadcast %3 : vector<36x1xf32> to vector<36x128xf32>
    %15 = arith.addf %13, %14 : vector<36x128xf32>
    %cst_11 = arith.constant 0.000000e+00 : f32
    %16 = vector.broadcast %cst_11 : f32 to vector<36x128xf32>
    %17 = arith.maximumf %15, %16 : vector<36x128xf32>
    %18 = vector.broadcast %4 : vector<36x1xf32> to vector<36x128xf32>
    %19 = arith.mulf %17, %18 : vector<36x128xf32>
    %cst_12 = arith.constant dense<0.000000e+00> : vector<128xf32>
    %20 = vector.multi_reduction <add>, %19, %cst_12 [0] : vector<36x128xf32> to vector<128xf32>
    %21 = vector.shape_cast %20 : vector<128xf32> to vector<1x128xf32>
    %22 = vector.broadcast %5 : vector<1x1xf32> to vector<1x128xf32>
    %23 = arith.addf %21, %22 : vector<1x128xf32>
    %cst_13 = arith.constant 5.000000e-01 : f32
    %24 = vector.broadcast %cst_13 : f32 to vector<1x128xf32>
    %25 = arith.mulf %24, %23 : vector<1x128xf32>
    %26 = math.tanh %25 : vector<1x128xf32>
    %cst_14 = arith.constant 5.000000e-01 : f32
    %27 = vector.broadcast %cst_14 : f32 to vector<1x128xf32>
    %28 = arith.mulf %27, %26 : vector<1x128xf32>
    %cst_15 = arith.constant 5.000000e-01 : f32
    %29 = vector.broadcast %cst_15 : f32 to vector<1x128xf32>
    %30 = arith.addf %28, %29 : vector<1x128xf32>
    %c0_16 = arith.constant 0 : index
    %c0_17 = arith.constant 0 : index
    %31 = vector.load %arg4[%c0_16, %c0_17] : memref<1x128xf32, #tpu.memory_space<vmem>>, vector<1x128xf32>
    tpu.vector_store %arg4[%c0_16, %c0_17], %30 {strides = array<i32>} : memref<1x128xf32, #tpu.memory_space<vmem>>, vector<1x128xf32>,
    return
  }
  func.func @transform_0(%arg0: i32) -> (i32, i32) {
    %c0_i32 = arith.constant 0 : i32
    %c0_i32_0 = arith.constant 0 : i32
    %c0_i32_1 = arith.constant 0 : i32
    return %c0_i32, %c0_i32_0 : i32, i32
  }
  func.func @transform_1(%arg0: i32) -> (i32, i32) {
    %c0_i32 = arith.constant 0 : i32
    %c0_i32_0 = arith.constant 0 : i32
    %c0_i32_1 = arith.constant 0 : i32
    return %c0_i32, %c0_i32_0 : i32, i32
  }
  func.func @transform_2(%arg0: i32) -> (i32, i32) {
    %c0_i32 = arith.constant 0 : i32
    %c0_i32_0 = arith.constant 0 : i32
    return %c0_i32, %arg0 : i32, i32
  }
  func.func @transform_3(%arg0: i32) -> (i32, i32) {
    %c0_i32 = arith.constant 0 : i32
    %c0_i32_0 = arith.constant 0 : i32
    return %c0_i32, %arg0 : i32, i32
  }
}

</mosaic_0001>

<llo_original>
// kernel: _policy_forward_packed.1
$region0: #{_policy_forward_packed.1}
  #allocation0 [shape = 'u32[]', space=smem, size = 0x4, offset = 0x4, fixed_abs, tag = 'smem constant byte address 0x4 - core index']
  #allocation1 [shape = 'u32[144,128]{1,0:T(1,128)}', space=vmem, size = 0x12000, scoped, tag = 'internal scratch']
  %s0 = inlined_call_operand.hbm [shape: bf16[80,128], index: 0, kind: input, shape index: {}]
  %s1 = inlined_call_operand.hbm [shape: f32[104,128], index: 1, kind: input, shape index: {}]
  %s2 = inlined_call_operand.vmem [shape: bf16[4,128], index: 2, kind: input, shape index: {}]
  %s3 = inlined_call_operand.vmem [shape: f32[1,128], index: 3, kind: output, shape index: {}]
  %s4 = sld [smem:[#allocation0]]
  $region30: #{_policy_forward_packed.1} parent=0
    _
  %s6 = ssub.s32 1, %s4
  %s7 = scalar_select 0, %s6, %s4
  $region1: #{_policy_forward_packed.1} parent=0
    #allocation2 [shape = 'u8[20480]{0}', space=vmem, size = 0x5000, scoped, tag = 'input window, operand 0, single buffered']
    #allocation3 [shape = 's32[1]{0}', space=sflag, size = 0x4, scoped, tag = 'scoped memory for _policy_forward_packed.1']
    #allocation4 [shape = 'u8[53248]{0}', space=vmem, size = 0xd000, scoped, tag = 'input window, operand 1, single buffered']
    #allocation5 [shape = 's32[1]{0}', space=sflag, size = 0x4, scoped, tag = 'scoped memory for _policy_forward_packed.1']
    %8 = vsyncpa [#allocation3], 0
    %9 = vsyncpa [#allocation5], 0
    // Predicated region
    $region2: #{_policy_forward_packed.1} parent=1 // pred_check
      _
    $region3: #{_policy_forward_packed.1} parent=1 // pred_check_branch
      %11 = sbr.rel (0) target = $region5
    $region4: #{_policy_forward_packed.1} parent=1 // pred_region
      %s13 = ssub.s32 640, 640
      %14 = vsyncadd [#allocation3], %s13
      %s15 = sshll.u32 [#allocation2], 4
      %s16 = int_to_ptr.vmem [resolvable:$true] %s15
      %21 = dma.hbm_to_vmem [thread:$0]  %s0, 640, %s16, [#allocation3], 64, 64, 4
    $region5: #{_policy_forward_packed.1} parent=1 // pred_fallthru
      _
    // Predicated region
    $region6: #{_policy_forward_packed.1} parent=1 // pred_check
      _
    $region7: #{_policy_forward_packed.1} parent=1 // pred_check_branch
      %23 = sbr.rel (0) target = $region9
    $region8: #{_policy_forward_packed.1} parent=1 // pred_region
      %s25 = ssub.s32 1664, 1664
      %26 = vsyncadd [#allocation5], %s25
      %s27 = sshll.u32 [#allocation4], 4
      %s28 = int_to_ptr.vmem [resolvable:$true] %s27
      %33 = dma.hbm_to_vmem [thread:$0]  %s1, 1664, %s28, [#allocation5], 128, 128, 8
    $region9: #{_policy_forward_packed.1} parent=1 // pred_fallthru
      _
    // Predicated region
    $region10: #{_policy_forward_packed.1} parent=1 // pred_check
      _
    $region11: #{_policy_forward_packed.1} parent=1 // pred_check_branch
      %35 = sbr.rel (0) target = $region13
    $region12: #{_policy_forward_packed.1} parent=1 // pred_region
      _
    $region13: #{_policy_forward_packed.1} parent=1 // pred_fallthru
      _
    // Predicated region
    $region14: #{_policy_forward_packed.1} parent=1 // pred_check
      _
    $region15: #{_policy_forward_packed.1} parent=1 // pred_check_branch
      %37 = sbr.rel (0) target = $region17
    $region16: #{_policy_forward_packed.1} parent=1 // pred_region
      %38 = dma.done [#allocation3], 640
    $region17: #{_policy_forward_packed.1} parent=1 // pred_fallthru
      _
    // Predicated region
    $region18: #{_policy_forward_packed.1} parent=1 // pred_check
      _
    $region19: #{_policy_forward_packed.1} parent=1 // pred_check_branch
      %40 = sbr.rel (0) target = $region21
    $region20: #{_policy_forward_packed.1} parent=1 // pred_region
      %41 = dma.done [#allocation5], 1664
    $region21: #{_policy_forward_packed.1} parent=1 // pred_fallthru
      _
    %v43 = vld [vmem:[#allocation2] sm:$0xf]
    %v44 = vld [vmem:[#allocation2 + $0x4] sm:$0xf]
    %v45 = vld [vmem:[#allocation2 + $0x8] sm:$0xf]
    %v46 = vld [vmem:[#allocation2 + $0x10] sm:$0xf]
    %v47 = vld [vmem:[#allocation2 + $0x14] sm:$0xf]
    %v48 = vld [vmem:[#allocation2 + $0x18] sm:$0xf]
    %v49 = vld [vmem:[#allocation2 + $0x1c] sm:$0xf]
    %v50 = vld [vmem:[#allocation2 + $0x20] sm:$0x3]
    %v51 = vld [vmem:[#allocation4] sm:$0xff]
    %v52 = vld [vmem:[#allocation4 + $0x8] sm:$0xff]
    %v53 = vld [vmem:[#allocation4 + $0x10] sm:$0xff]
    %v54 = vld [vmem:[#allocation4 + $0x18] sm:$0xff]
    %v55 = vld [vmem:[#allocation4 + $0x20] sm:$0xff]
    %v56 = vld [vmem:[#allocation4 + $0x28] sm:$0xff]
    %v57 = vld [vmem:[#allocation4 + $0x30] sm:$0xff]
    %v58 = vld [vmem:[#allocation4 + $0x38] sm:$0xf]
    %v59 = vld [vmem:[#allocation4 + $0x40] sm:$0xff]
    %v60 = vld [vmem:[#allocation4 + $0x48] sm:$0xff]
    %v61 = vld [vmem:[#allocation4 + $0x50] sm:$0xff]
    %v62 = vld [vmem:[#allocation4 + $0x58] sm:$0xff]
    %v63 = vld [vmem:[#allocation4 + $0x60] sm:$0xf]
    %v64 = vld [vmem:[#allocation4] sm:$0x1]
    %v65 = vld [vmem:[%s2] sm:$0x3]
    %67 = vset.pattern.permute.xlu0 0
    %68 = vperm.xlu0 %67, %v51
    %v69 = vpop.permute.xlu0 %68
    %72 = vset.pattern.permute.xlu0 0
    %73 = vperm.xlu0 %72, %v52
    %v74 = vpop.permute.xlu0 %73
    %77 = vset.pattern.permute.xlu0 0
    %78 = vperm.xlu0 %77, %v53
    %v79 = vpop.permute.xlu0 %78
    %v84 = vunpack.c.l.b16 %v43
    %v85 = vunpack.c.l.b16 %v44
    %v86 = vunpack.c.l.b16 %v45
    %v87 = vpack.c.b16 %v85, %v84
    %v88 = vpack.c.b16 %v86, %v86
    %vm89 = vcmask 31744
    %v91 = vsel %vm89, %v87, 0
    %v94 = vsel %vm89, %v88, 0
    %vm96 = vcmask 1041408
    %v98 = vsel %vm96, %v65, 0
    %100 = vmatprep.subr.bf16.mxu0 0
    %101 = vmatpush1.bf16.msra.mxu0 %v98
    %102 = vmatprep.subr.bf16.mxu0 0
    %103 = vmatpush1.bf16.msra.mxu0 0
    %104 = vmatprep.subr.bf16.mxu0 0
    %105 = vmatpush1.bf16.msra.mxu0 0
    %106 = vmatprep.subr.bf16.mxu0 0
    %107 = vmatpush1.bf16.msra.mxu0 0
    %108 = vmatprep.subr.bf16.mxu0 0
    %109 = vmatpush1.bf16.msra.mxu0 0
    %110 = vmatprep.subr.bf16.mxu0 0
    %111 = vmatpush1.bf16.msra.mxu0 0
    %112 = vmatprep.subr.bf16.mxu0 0
    %113 = vmatpush1.bf16.msra.mxu0 0
    %114 = vmatprep.subr.bf16.mxu0 0
    %115 = vmatpush1.bf16.msra.mxu0 0
    %116 = vmatprep.subr.bf16.mxu0 0
    %117 = vmatpush1.bf16.msra.mxu0 0
    %118 = vmatprep.subr.bf16.mxu0 0
    %119 = vmatpush1.bf16.msra.mxu0 0
    %120 = vmatprep.subr.bf16.mxu0 0
    %121 = vmatpush1.bf16.msra.mxu0 0
    %122 = vmatprep.subr.bf16.mxu0 0
    %123 = vmatpush1.bf16.msra.mxu0 0
    %124 = vmatprep.subr.bf16.mxu0 0
    %125 = vmatpush1.bf16.msra.mxu0 0
    %126 = vmatprep.subr.bf16.mxu0 0
    %127 = vmatpush1.bf16.msra.mxu0 0
    %128 = vmatprep.subr.bf16.mxu0 0
    %129 = vmatpush1.bf16.msra.mxu0 0
    %130 = vmatprep.subr.bf16.mxu0 0
    %131 = vmatpush1.bf16.msra.mxu0 0
    %132 = vmatprep.mubr.bf16.mxu0 0
    %133 = vmatmul.mubr.bf16.gmra.mrb[0].mxu0 %v91
    %v134 = vpop.f32.mrb[0].mxu0
    %v135 = vadd.f32 %v69, %v134
    %v136 = vpop.f32.mrb[0].mxu0
    %v137 = vpop.f32.mrb[0].mxu0
    %v138 = vadd.f32 %v74, %v137
    %v139 = vpop.f32.mrb[0].mxu0
    %140 = vmatprep.mubr.bf16.mxu0 0
    %141 = vmatmul.mubr.bf16.gmra.mrb[0].mxu0 %v94
    %v142 = vpop.f32.mrb[0].mxu0
    %v143 = vadd.f32 %v79, %v142
    %v144 = vpop.f32.mrb[0].mxu0
    %v145 = vpop.f32.mrb[0].mxu0
    %v146 = vpop.f32.mrb[0].mxu0
    %147 = vdwg.mxu0
    %v148 = vmax.f32 %v135, 0.0
    %v149 = vmax.f32 %v138, 0.0
    %v150 = vmax.f32 %v143, 0.0
    %v151 = vpack.c.bf16 %v149, %v148
    %v152 = vpack.c.bf16 %v150, %v150
    %154 = vset.pattern.permute.xlu0 0
    %155 = vperm.xlu0 %154, %v54
    %v156 = vpop.permute.xlu0 %155
    %159 = vset.pattern.permute.xlu0 0
    %160 = vperm.xlu0 %159, %v55
    %v161 = vpop.permute.xlu0 %160
    %164 = vset.pattern.permute.xlu0 0
    %165 = vperm.xlu0 %164, %v56
    %v166 = vpop.permute.xlu0 %165
    %169 = vset.pattern.permute.xlu0 0
    %170 = vperm.xlu0 %169, %v57
    %v171 = vpop.permute.xlu0 %170
    %174 = vset.pattern.permute.xlu0 0
    %175 = vperm.xlu0 %174, %v58
    %v176 = vpop.permute.xlu0 %175
    %v183 = vunpack.c.l.b16 %v46
    %v184 = vunpack.c.l.b16 %v47
    %v185 = vunpack.c.l.b16 %v48
    %v186 = vunpack.c.l.b16 %v49
    %v187 = vunpack.c.l.b16 %v50
    %v188 = vpack.c.b16 %v184, %v183
    %v189 = vpack.c.b16 %v186, %v185
    %v190 = vpack.c.b16 %v187, %v187
    %vm191 = vcmask 195584
    %v193 = vsel %vm191, %v188, 0
    %v196 = vsel %vm191, %v189, 0
    %v199 = vsel %vm191, %v190, 0
    %vm201 = vcmask 1043456
    %v203 = vsel %vm201, %v152, 0
    %205 = vmatprep.subr.bf16.mxu0 0
    %206 = vmatpush1.bf16.msra.mxu0 %v151
    %207 = vmatprep.subr.bf16.mxu0 0
    %208 = vmatpush1.bf16.msra.mxu0 %v203
    %209 = vmatprep.subr.bf16.mxu0 0
    %210 = vmatpush1.bf16.msra.mxu0 0
    %211 = vmatprep.subr.bf16.mxu0 0
    %212 = vmatpush1.bf16.msra.mxu0 0
    %213 = vmatprep.subr.bf16.mxu0 0
    %214 = vmatpush1.bf16.msra.mxu0 0
    %215 = vmatprep.subr.bf16.mxu0 0
    %216 = vmatpush1.bf16.msra.mxu0 0
    %217 = vmatprep.subr.bf16.mxu0 0
    %218 = vmatpush1.bf16.msra.mxu0 0
    %219 = vmatprep.subr.bf16.mxu0 0
    %220 = vmatpush1.bf16.msra.mxu0 0
    %221 = vmatprep.subr.bf16.mxu0 0
    %222 = vmatpush1.bf16.msra.mxu0 0
    %223 = vmatprep.subr.bf16.mxu0 0
    %224 = vmatpush1.bf16.msra.mxu0 0
    %225 = vmatprep.subr.bf16.mxu0 0
    %226 = vmatpush1.bf16.msra.mxu0 0
    %227 = vmatprep.subr.bf16.mxu0 0
    %228 = vmatpush1.bf16.msra.mxu0 0
    %229 = vmatprep.subr.bf16.mxu0 0
    %230 = vmatpush1.bf16.msra.mxu0 0
    %231 = vmatprep.subr.bf16.mxu0 0
    %232 = vmatpush1.bf16.msra.mxu0 0
    %233 = vmatprep.subr.bf16.mxu0 0
    %234 = vmatpush1.bf16.msra.mxu0 0
    %235 = vmatprep.subr.bf16.mxu0 0
    %236 = vmatpush1.bf16.msra.mxu0 0
    %237 = vmatprep.mubr.bf16.mxu0 0
    %238 = vmatmul.mubr.bf16.gmra.mrb[0].mxu0 %v193
    %v239 = vpop.f32.mrb[0].mxu0
    %v240 = vadd.f32 %v156, %v239
    %v241 = vpop.f32.mrb[0].mxu0
    %v242 = vpop.f32.mrb[0].mxu0
    %v243 = vadd.f32 %v161, %v242
    %v244 = vpop.f32.mrb[0].mxu0
    %245 = vmatprep.mubr.bf16.mxu0 0
    %246 = vmatmul.mubr.bf16.gmra.mrb[0].mxu0 %v196
    %v247 = vpop.f32.mrb[0].mxu0
    %v248 = vadd.f32 %v166, %v247
    %v249 = vpop.f32.mrb[0].mxu0
    %v250 = vpop.f32.mrb[0].mxu0
    %v251 = vadd.f32 %v171, %v250
    %v252 = vpop.f32.mrb[0].mxu0
    %253 = vmatprep.mubr.bf16.mxu0 0
    %254 = vmatmul.mubr.bf16.gmra.mrb[0].mxu0 %v199
    %v255 = vpop.f32.mrb[0].mxu0
    %v256 = vadd.f32 %v176, %v255
    %v257 = vpop.f32.mrb[0].mxu0
    %v258 = vpop.f32.mrb[0].mxu0
    %v259 = vpop.f32.mrb[0].mxu0
    %260 = vdwg.mxu0
    %v261 = vmax.f32 %v240, 0.0
    %v262 = vmax.f32 %v243, 0.0
    %v263 = vmax.f32 %v248, 0.0
    %v264 = vmax.f32 %v251, 0.0
    %v265 = vmax.f32 %v256, 0.0
    %267 = vset.pattern.permute.xlu0 0
    %268 = vperm.xlu0 %267, %v59
    %v269 = vpop.permute.xlu0 %268
    %272 = vset.pattern.permute.xlu0 0
    %273 = vperm.xlu0 %272, %v60
    %v274 = vpop.permute.xlu0 %273
    %277 = vset.pattern.permute.xlu0 0
    %278 = vperm.xlu0 %277, %v61
    %v279 = vpop.permute.xlu0 %278
    %282 = vset.pattern.permute.xlu0 0
    %283 = vperm.xlu0 %282, %v62
    %v284 = vpop.permute.xlu0 %283
    %287 = vset.pattern.permute.xlu0 0
    %288 = vperm.xlu0 %287, %v63
    %v289 = vpop.permute.xlu0 %288
    %v291 = vmul.f32 %v261, %v269
    %v292 = vmul.f32 %v262, %v274
    %v293 = vmul.f32 %v263, %v279
    %v294 = vmul.f32 %v264, %v284
    %v295 = vmul.f32 %v265, %v289
    %v296 = vadd.f32 %v291, %v292
    %v297 = vadd.f32 %v296, %v293
    %v298 = vadd.f32 %v297, %v294
    %v299 = vsel %vm201, %v295, 0.0
    %v300 = vadd.f32 %v298, %v299
    %v301 = vrot.slane %v300, 4
    %v302 = vadd.f32 %v300, %v301
    %v303 = vrot.slane %v302, 2
    %v304 = vadd.f32 %v302, %v303
    %v305 = vrot.slane %v304, 1
    %v306 = vadd.f32 %v304, %v305
    %308 = vset.pattern.permute.xlu0 1
    %309 = vperm.xlu0 %308, %v64
    %v310 = vpop.permute.xlu0 %309
    %v312 = vadd.f32 %v306, %v310
    %v313 = vmul.f32 %v312, 0.5
    %v314 = vtanh.pop %v313
    %v315 = vmul.f32 %v314, 0.5
    %v316 = vadd.f32 %v315, 0.5
    %317 = vst [vmem:[%s3] sm:$0x1] %v316
    // Predicated region
    $region22: #{_policy_forward_packed.1} parent=1 // pred_check
      _
    $region23: #{_policy_forward_packed.1} parent=1 // pred_check_branch
      %319 = sbr.rel (0) target = $region25
    $region24: #{_policy_forward_packed.1} parent=1 // pred_region
      _
    $region25: #{_policy_forward_packed.1} parent=1 // pred_fallthru
      _
    // Predicated region
    $region26: #{_policy_forward_packed.1} parent=1 // pred_check
      _
    $region27: #{_policy_forward_packed.1} parent=1 // pred_check_branch
      %321 = sbr.rel (0) target = $region29
    $region28: #{_policy_forward_packed.1} parent=1 // pred_region
      _
    $region29: #{_policy_forward_packed.1} parent=1 // pred_fallthru
      _
    %322 = vsyncpa [#allocation3], 1
    %323 = vsyncpa [#allocation5], 1

</llo_original>
